<compile_context>
chip_gen: v7x
topology: tpu7x:2x2x1
jax: 0.10.0
libtpu: 0.0.40
codegen_flags: <defaults>
</compile_context>

<pallas_src>
import functools

import jax
import jax.numpy as jnp
from jax.experimental import pallas as pl
from jax.experimental.pallas import tpu as pltpu


def _fused_mlp_kernel(*refs, n_layers, final_relu, negative_slope):
    """One grid step = one (batch, point-tile) block, all layers applied in VMEM.

    refs layout:
      refs[0]                     : x_ref   (1, C_in, TN)
      refs[1 : 1+n_layers]        : w_refs  (C_out_l, C_in_l)   -- resident (constant index map)
      refs[1+n_layers : 1+2n]     : b_refs  (C_out_l, 1)
      refs[1+2n]                  : o_ref   (1, C_last, TN)
    """
    x_ref = refs[0]
    w_refs = refs[1:1 + n_layers]
    b_refs = refs[1 + n_layers:1 + 2 * n_layers]
    o_ref = refs[1 + 2 * n_layers]

    y = x_ref[0]                                            # (C_in, TN)
    for l in range(n_layers):
        w = w_refs[l][...]                                  # (C_out, C_in), loaded once per step
        b = b_refs[l][...].astype(jnp.float32)              # (C_out, 1) -> broadcasts over lanes
        # 1x1 Conv1d == (C_out, C_in) @ (C_in, TN) on the MXU, f32 accumulation.
        y = jnp.dot(w, y.astype(w.dtype), preferred_element_type=jnp.float32) + b
        if l < n_layers - 1 or final_relu:
            # F.leaky_relu default negative_slope = 0.01 (kept in f32 on the VPU).
            y = jnp.where(y > 0, y, negative_slope * y)
    o_ref[0] = y.astype(o_ref.dtype)


def _pick_tile_n(n, max_tile):
    """Largest multiple of 128 that divides N and is <= max_tile; else the full N."""
    if n <= max_tile or n % 128 != 0:
        return n
    t = (min(max_tile, n) // 128) * 128
    while t >= 128:
        if n % t == 0:
            return t
        t -= 128
    return n


def fused_pointwise_mlp(x, weights, biases, *, final_relu=False, tile_n=512,
                        negative_slope=0.01):
    """Apply a stack of 1x1 convs (+ fused leaky_relu) in one pallas_call.

    x: [B, C_in, N]; weights[l]: [C_out_l, C_in_l]; biases[l]: [C_out_l]
    returns [B, C_last, N] in x.dtype.
    """
    B, C_in, N = x.shape
    n_layers = len(weights)
    assert n_layers >= 1 and len(biases) == n_layers
    C_last = int(weights[-1].shape[0])

    tn = _pick_tile_n(N, tile_n)
    grid = (B, N // tn)

    b2d = [jnp.reshape(b, (-1, 1)) for b in biases]

    in_specs = [pl.BlockSpec((1, C_in, tn), lambda i, j: (i, 0, j))]
    in_specs += [pl.BlockSpec(tuple(w.shape), lambda i, j: (0, 0)) for w in weights]
    in_specs += [pl.BlockSpec(tuple(b.shape), lambda i, j: (0, 0)) for b in b2d]
    out_spec = pl.BlockSpec((1, C_last, tn), lambda i, j: (i, 0, j))

    kernel = functools.partial(_fused_mlp_kernel, n_layers=n_layers,
                               final_relu=final_relu, negative_slope=negative_slope)

    itemsize = x.dtype.itemsize
    params_bytes = sum(int(w.size) * w.dtype.itemsize for w in weights) \
        + sum(int(b.size) * b.dtype.itemsize for b in b2d)
    cost = pl.CostEstimate(
        flops=2 * B * N * sum(int(w.shape[0]) * int(w.shape[1]) for w in weights),
        transcendentals=0,
        bytes_accessed=int(x.size) * itemsize + B * C_last * N * itemsize + params_bytes)

    # Rough VMEM working set: double-buffered in/out tiles + f32 intermediates + params.
    c_max = max([C_in] + [int(w.shape[0]) for w in weights])
    vmem_need = 2 * (C_in + C_last) * tn * itemsize + 3 * c_max * tn * 4 + 2 * params_bytes
    vmem_limit = None
    if vmem_need > 12 * 1024 * 1024:
        # Raise the scoped-VMEM limit (v5e default is only 16 MiB); stay under v7x's 64 MiB.
        vmem_limit = int(min(2 * vmem_need, 64 * 1024 * 1024))

    return pl.pallas_call(
        kernel,
        out_shape=jax.ShapeDtypeStruct((B, C_last, N), x.dtype),
        grid=grid,
        in_specs=in_specs,
        out_specs=out_spec,
        compiler_params=pltpu.CompilerParams(
            dimension_semantics=("parallel", "parallel"),
            vmem_limit_bytes=vmem_limit),
        cost_estimate=cost,
    )(x, *weights, *b2d)


class PoseClassifierPallas:
    """JAX/Pallas port of lib/model/PoseClassifier.PoseClassifier (sequential branch)."""

    def __init__(self, filter_channels, num_views=1, last_op=None, *, key,
                 dtype=jnp.float32):
        self.filter_channels = list(filter_channels)
        self.num_views = num_views
        self.last_op = last_op
        self.weights = []
        self.biases = []
        for l in range(len(filter_channels) - 1):
            c_in, c_out = filter_channels[l], filter_channels[l + 1]
            key, kw, kb = jax.random.split(key, 3)
            bound = 1.0 / jnp.sqrt(jnp.float32(c_in))
            self.weights.append(
                jax.random.uniform(kw, (c_out, c_in), jnp.float32, -bound, bound).astype(dtype))
            self.biases.append(
                jax.random.uniform(kb, (c_out,), jnp.float32, -bound, bound).astype(dtype))

    def __call__(self, feature, *, tile_n=512):
        """feature: [B, C_in, N] -> [B, C_last, N] (B divided by num_views if > 1)."""
        n_layers = len(self.weights)
        if self.num_views > 1:
            mid = n_layers // 2
            # Layers 0..mid fused (leaky_relu after layer `mid` iff it is not the last layer,
            # matching the PyTorch ordering conv -> relu -> multi-view mean).
            y = fused_pointwise_mlp(feature, self.weights[:mid + 1], self.biases[:mid + 1],
                                    final_relu=(mid != n_layers - 1), tile_n=tile_n)
            B, C, N = y.shape
            y = y.reshape(-1, self.num_views, C, N).mean(axis=1)
            if mid + 1 < n_layers:
                y = fused_pointwise_mlp(y, self.weights[mid + 1:], self.biases[mid + 1:],
                                        final_relu=False, tile_n=tile_n)
        else:
            y = fused_pointwise_mlp(feature, self.weights, self.biases,
                                    final_relu=False, tile_n=tile_n)
        if self.last_op is not None:
            y = self.last_op(y)
        return y


def _reference_forward(weights, biases, feature, num_views=1, last_op=None):
    """Pure-jnp (f32) reference for correctness checking."""
    y = feature.astype(jnp.float32)
    n = len(weights)
    for i in range(n):
        w = weights[i].astype(jnp.float32)
        b = biases[i].astype(jnp.float32)
        y = jnp.einsum('oc,bcn->bon', w, y) + b[None, :, None]
        if i != n - 1:
            y = jnp.where(y > 0, y, 0.01 * y)
        if num_views > 1 and i == n // 2:
            B, C, N = y.shape
            y = y.reshape(-1, num_views, C, N).mean(axis=1)
    if last_op is not None:
        y = last_op(y)
    return y


if __name__ == "__main__":
    key = jax.random.PRNGKey(0)
    key, k_feat, k_p1, k_p2, k_feat2 = jax.random.split(key, 5)

    # --- Test 1: sequential MLP head, f32, single fused kernel, grid (B, N//TN) = (2, 4). ---
    filter_channels = [8, 32, 16, 1]
    B, N = 2, 2048
    feature = jax.random.normal(k_feat, (B, filter_channels[0], N), jnp.float32)
    model = PoseClassifierPallas(filter_channels, num_views=1, last_op=None, key=k_p1)
    out = jax.block_until_ready(model(feature, tile_n=512))
    ref = _reference_forward(model.weights, model.biases, feature)
    assert out.shape == (B, 1, N), out.shape
    assert jnp.allclose(out, ref, atol=1e-4, rtol=1e-4), "f32 mismatch vs reference"

    # --- Test 2: multi-view pooling + last_op (two fused calls around the view-mean). ---
    num_views = 2
    B2, N2 = 4, 1024
    feat2 = jax.random.normal(k_feat2, (B2, filter_channels[0], N2), jnp.float32)
    model2 = PoseClassifierPallas(filter_channels, num_views=num_views,
                                  last_op=jax.nn.sigmoid, key=k_p2)
    out2 = jax.block_until_ready(model2(feat2, tile_n=512))
    ref2 = _reference_forward(model2.weights, model2.biases, feat2,
                              num_views=num_views, last_op=jax.nn.sigmoid)
    assert out2.shape == (B2 // num_views, 1, N2), out2.shape
    assert jnp.allclose(out2, ref2, atol=1e-4, rtol=1e-4), "multi-view mismatch vs reference"

    # --- Test 3: bf16 storage dtype (halves HBM bytes; f32 accumulation in-kernel). ---
    model_bf16 = PoseClassifierPallas(filter_channels, num_views=1, last_op=None,
                                      key=k_p1, dtype=jnp.bfloat16)
    out_bf16 = jax.block_until_ready(model_bf16(feature.astype(jnp.bfloat16), tile_n=512))
    ref_bf16 = _reference_forward(model_bf16.weights, model_bf16.biases,
                                  feature.astype(jnp.bfloat16))
    assert out_bf16.shape == (B, 1, N), out_bf16.shape
    assert jnp.allclose(out_bf16.astype(jnp.float32), ref_bf16, atol=1e-1, rtol=1e-1), \
        "bf16 mismatch vs reference"

    print("KERNEL_OK")
</pallas_src>

<mosaic_0001>
module attributes {stable_mosaic.version = 11 : i64} {
  func.func @_fused_mlp_kernel(%arg0: i32, %arg1: i32, %arg2: memref<1x8x512xf32, #tpu.memory_space<vmem>>, %arg3: memref<32x8xf32, #tpu.memory_space<vmem>>, %arg4: memref<16x32xf32, #tpu.memory_space<vmem>>, %arg5: memref<1x16xf32, #tpu.memory_space<vmem>>, %arg6: memref<32x1xf32, #tpu.memory_space<vmem>>, %arg7: memref<16x1xf32, #tpu.memory_space<vmem>>, %arg8: memref<1x1xf32, #tpu.memory_space<vmem>>, %arg9: memref<1x1x512xf32, #tpu.memory_space<vmem>>) attributes {dimension_semantics = [#tpu.dimension_semantics<parallel>, #tpu.dimension_semantics<parallel>], iteration_bounds = array<i64: 2, 4>, scalar_prefetch = 0 : i64, scratch_operands = 0 : i64, tpu.core_type = #tpu.core_type<tc>, window_params = [{transform_indices = @transform_0, window_bounds = array<i64: 1, 8, 512>}, {pipeline_mode = #tpu.pipeline_mode<synchronous>, transform_indices = @transform_1, window_bounds = array<i64: 32, 8>}, {pipeline_mode = #tpu.pipeline_mode<synchronous>, transform_indices = @transform_2, window_bounds = array<i64: 16, 32>}, {pipeline_mode = #tpu.pipeline_mode<synchronous>, transform_indices = @transform_3, window_bounds = array<i64: 1, 16>}, {pipeline_mode = #tpu.pipeline_mode<synchronous>, transform_indices = @transform_4, window_bounds = array<i64: 32, 1>}, {pipeline_mode = #tpu.pipeline_mode<synchronous>, transform_indices = @transform_5, window_bounds = array<i64: 16, 1>}, {pipeline_mode = #tpu.pipeline_mode<synchronous>, transform_indices = @transform_6, window_bounds = array<i64: 1, 1>}, {transform_indices = @transform_7, window_bounds = array<i64: 1, 1, 512>}]} {
    %c0 = arith.constant 0 : index
    %c0_0 = arith.constant 0 : index
    %c0_1 = arith.constant 0 : index
    %0 = vector.load %arg2[%c0, %c0_0, %c0_1] : memref<1x8x512xf32, #tpu.memory_space<vmem>>, vector<1x8x512xf32>
    %1 = vector.shape_cast %0 : vector<1x8x512xf32> to vector<8x512xf32>
    %c0_2 = arith.constant 0 : index
    %c0_3 = arith.constant 0 : index
    %2 = vector.load %arg3[%c0_2, %c0_3] : memref<32x8xf32, #tpu.memory_space<vmem>>, vector<32x8xf32>
    %c0_4 = arith.constant 0 : index
    %c0_5 = arith.constant 0 : index
    %3 = vector.load %arg6[%c0_4, %c0_5] : memref<32x1xf32, #tpu.memory_space<vmem>>, vector<32x1xf32>
    %cst = arith.constant dense<0.000000e+00> : vector<32x512xf32>
    %4 = tpu.matmul %2, %1, %cst {dimension_numbers = #tpu.dot_dimension_numbers<[1], [0], [0], [1], [0, 0, 1, 1], [], []>} : vector<32x8xf32>, vector<8x512xf32>, vector<32x512xf32> -> vector<32x512xf32>
    %5 = vector.broadcast %3 : vector<32x1xf32> to vector<32x512xf32>
    %6 = arith.addf %4, %5 : vector<32x512xf32>
    %cst_6 = arith.constant 0.000000e+00 : f32
    %7 = vector.broadcast %cst_6 : f32 to vector<32x512xf32>
    %8 = arith.cmpf ogt, %6, %7 : vector<32x512xf32>
    %cst_7 = arith.constant 0.00999999977 : f32
    %9 = vector.broadcast %cst_7 : f32 to vector<32x512xf32>
    %10 = arith.mulf %9, %6 : vector<32x512xf32>
    %11 = arith.select %8, %6, %10 : vector<32x512xi1>, vector<32x512xf32>
    %c0_8 = arith.constant 0 : index
    %c0_9 = arith.constant 0 : index
    %12 = vector.load %arg4[%c0_8, %c0_9] : memref<16x32xf32, #tpu.memory_space<vmem>>, vector<16x32xf32>
    %c0_10 = arith.constant 0 : index
    %c0_11 = arith.constant 0 : index
    %13 = vector.load %arg7[%c0_10, %c0_11] : memref<16x1xf32, #tpu.memory_space<vmem>>, vector<16x1xf32>
    %cst_12 = arith.constant dense<0.000000e+00> : vector<16x512xf32>
    %14 = tpu.matmul %12, %11, %cst_12 {dimension_numbers = #tpu.dot_dimension_numbers<[1], [0], [0], [1], [0, 0, 1, 1], [], []>} : vector<16x32xf32>, vector<32x512xf32>, vector<16x512xf32> -> vector<16x512xf32>
    %15 = vector.broadcast %13 : vector<16x1xf32> to vector<16x512xf32>
    %16 = arith.addf %14, %15 : vector<16x512xf32>
    %cst_13 = arith.constant 0.000000e+00 : f32
    %17 = vector.broadcast %cst_13 : f32 to vector<16x512xf32>
    %18 = arith.cmpf ogt, %16, %17 : vector<16x512xf32>
    %cst_14 = arith.constant 0.00999999977 : f32
    %19 = vector.broadcast %cst_14 : f32 to vector<16x512xf32>
    %20 = arith.mulf %19, %16 : vector<16x512xf32>
    %21 = arith.select %18, %16, %20 : vector<16x512xi1>, vector<16x512xf32>
    %c0_15 = arith.constant 0 : index
    %c0_16 = arith.constant 0 : index
    %22 = vector.load %arg5[%c0_15, %c0_16] : memref<1x16xf32, #tpu.memory_space<vmem>>, vector<1x16xf32>
    %c0_17 = arith.constant 0 : index
    %c0_18 = arith.constant 0 : index
    %23 = vector.load %arg8[%c0_17, %c0_18] : memref<1x1xf32, #tpu.memory_space<vmem>>, vector<1x1xf32>
    %cst_19 = arith.constant dense<0.000000e+00> : vector<1x512xf32>
    %24 = tpu.matmul %22, %21, %cst_19 {dimension_numbers = #tpu.dot_dimension_numbers<[1], [0], [0], [1], [0, 0, 1, 1], [], []>} : vector<1x16xf32>, vector<16x512xf32>, vector<1x512xf32> -> vector<1x512xf32>
    %25 = vector.broadcast %23 : vector<1x1xf32> to vector<1x512xf32>
    %26 = arith.addf %24, %25 : vector<1x512xf32>
    %c0_20 = arith.constant 0 : index
    %c0_21 = arith.constant 0 : index
    %c0_22 = arith.constant 0 : index
    %27 = vector.load %arg9[%c0_20, %c0_21, %c0_22] : memref<1x1x512xf32, #tpu.memory_space<vmem>>, vector<1x1x512xf32>
    %28 = vector.shape_cast %27 : vector<1x1x512xf32> to vector<1x512xf32>
    %29 = vector.shape_cast %26 : vector<1x512xf32> to vector<1x1x512xf32>
    tpu.vector_store %arg9[%c0_20, %c0_21, %c0_22], %29 {strides = array<i32>} : memref<1x1x512xf32, #tpu.memory_space<vmem>>, vector<1x1x512xf32>,
    return
  }
  func.func @transform_0(%arg0: i32, %arg1: i32) -> (i32, i32, i32) {
    %c0_i32 = arith.constant 0 : i32
    %c0_i32_0 = arith.constant 0 : i32
    return %arg0, %c0_i32, %arg1 : i32, i32, i32
  }
  func.func @transform_1(%arg0: i32, %arg1: i32) -> (i32, i32) {
    %c0_i32 = arith.constant 0 : i32
    %c0_i32_0 = arith.constant 0 : i32
    %c0_i32_1 = arith.constant 0 : i32
    return %c0_i32, %c0_i32_0 : i32, i32
  }
  func.func @transform_2(%arg0: i32, %arg1: i32) -> (i32, i32) {
    %c0_i32 = arith.constant 0 : i32
    %c0_i32_0 = arith.constant 0 : i32
    %c0_i32_1 = arith.constant 0 : i32
    return %c0_i32, %c0_i32_0 : i32, i32
  }
  func.func @transform_3(%arg0: i32, %arg1: i32) -> (i32, i32) {
    %c0_i32 = arith.constant 0 : i32
    %c0_i32_0 = arith.constant 0 : i32
    %c0_i32_1 = arith.constant 0 : i32
    return %c0_i32, %c0_i32_0 : i32, i32
  }
  func.func @transform_4(%arg0: i32, %arg1: i32) -> (i32, i32) {
    %c0_i32 = arith.constant 0 : i32
    %c0_i32_0 = arith.constant 0 : i32
    %c0_i32_1 = arith.constant 0 : i32
    return %c0_i32, %c0_i32_0 : i32, i32
  }
  func.func @transform_5(%arg0: i32, %arg1: i32) -> (i32, i32) {
    %c0_i32 = arith.constant 0 : i32
    %c0_i32_0 = arith.constant 0 : i32
    %c0_i32_1 = arith.constant 0 : i32
    return %c0_i32, %c0_i32_0 : i32, i32
  }
  func.func @transform_6(%arg0: i32, %arg1: i32) -> (i32, i32) {
    %c0_i32 = arith.constant 0 : i32
    %c0_i32_0 = arith.constant 0 : i32
    %c0_i32_1 = arith.constant 0 : i32
    return %c0_i32, %c0_i32_0 : i32, i32
  }
  func.func @transform_7(%arg0: i32, %arg1: i32) -> (i32, i32, i32) {
    %c0_i32 = arith.constant 0 : i32
    %c0_i32_0 = arith.constant 0 : i32
    return %arg0, %c0_i32, %arg1 : i32, i32, i32
  }
}

</mosaic_0001>

<llo_original>
// kernel: tpu_custom_call.1
$region0: #{tpu_custom_call.1}
  #allocation0 [shape = 'u32[]', space=smem, size = 0x4, offset = 0x4, fixed_abs, tag = 'smem constant byte address 0x4 - core index']
  #allocation1 [shape = 'u32[144,128]{1,0:T(1,128)}', space=vmem, size = 0x12000, scoped, tag = 'internal scratch']
  #allocation2 [shape = 'f32[1,1]{1,0:T(1,128)S(1)}', space=vmem, size = 0x200, scoped, tag = 'scoped memory for tpu_custom_call.1']
  %s0 = inlined_call_operand.hbm [shape: f32[2,8,2048], index: 0, kind: input, shape index: {}]
  %s1 = inlined_call_operand.vmem [shape: f32[32,8], index: 1, kind: input, shape index: {}]
  %s2 = inlined_call_operand.vmem [shape: f32[16,32], index: 2, kind: input, shape index: {}]
  %s3 = inlined_call_operand.vmem [shape: f32[1,16], index: 3, kind: input, shape index: {}]
  %s4 = inlined_call_operand.vmem [shape: f32[32,1], index: 4, kind: input, shape index: {}]
  %s5 = inlined_call_operand.vmem [shape: f32[16,1], index: 5, kind: input, shape index: {}]
  %s6 = inlined_call_operand.<no memory space> [shape: f32[1,1], index: 6, kind: input, shape index: {}]
  %s7 = inlined_call_operand.hbm [shape: f32[2,1,2048], index: 7, kind: output, shape index: {}]
  %s8 = sld [smem:[#allocation0]]
  $region65: #{tpu_custom_call.1} parent=0
    _
  %s10 = ssub.s32 1, %s8
  %s11 = scalar_select 0, %s10, %s8
  %v12 = vstv %s6
  %13 = vst [vmem:[#allocation2] sm:$0x1] %v12
  $region1: #{tpu_custom_call.1} parent=0
    #allocation3 [shape = 'u8[32768]{0}', space=vmem, size = 0x8000, scoped, tag = 'input window, operand 0']
    #allocation4 [shape = 's32[2]{0}', space=sflag, size = 0x8, scoped, tag = 'scoped memory for tpu_custom_call.1']
    #allocation5 [shape = 's32[2]{0}', space=sflag, size = 0x8, scoped, tag = 'scoped memory for tpu_custom_call.1']
    #allocation6 [shape = 'u8[4096]{0}', space=vmem, size = 0x1000, scoped, tag = 'output window, operand 0']
    %14 = vsyncpa [#allocation4], 0
    %s15 = scalar_lea.sflag [#allocation4], 1
    %16 = vsyncpa %s15, 0
    %17 = vsyncpa [#allocation5], 0
    %s18 = scalar_lea.sflag [#allocation5], 1
    %19 = vsyncpa %s18, 0
    loop: start=0, step=1, limit=10
    $region2: #{tpu_custom_call.1} parent=1 // loop_pre_header
      _
    $region3: #{tpu_custom_call.1} parent=1 // loop_header
      %s21 = sphi 0, %s25
      %p22 = scmp.ge.s32.totalorder %s21, 10
      %s28 = sphi 0, %s40
      %s29 = sphi 0, %s36
      %s30 = sphi 0, %s28
      %s31 = sphi 0, %s29
      %s32 = sphi 0, %s30
      %s33 = sphi 0, %s31
      %s45 = sphi 0, %s47
      %s48 = sphi 0, %s45
      %s49 = sphi 0, %s48
      %s65 = sphi 0, %s49
      %s69 = sphi 0, %s69
      %s71 = sphi 0, %s69
      %s72 = sphi 0, %s71
      %s86 = sphi 0, %s72
      %s90 = sphi 0, %s90
      %s92 = sphi 0, %s90
      %s93 = sphi 0, %s92
      %s107 = sphi 0, %s93
      %s111 = sphi 0, %s111
      %s113 = sphi 0, %s111
      %s114 = sphi 0, %s113
      %s128 = sphi 0, %s114
      %s132 = sphi 0, %s132
      %s134 = sphi 0, %s132
      %s135 = sphi 0, %s134
      %s149 = sphi 0, %s135
      %s153 = sphi 0, %s153
      %s155 = sphi 0, %s153
      %s156 = sphi 0, %s155
      %s170 = sphi 0, %s156
      %s174 = sphi 0, %s174
      %s176 = sphi 0, %s174
      %s177 = sphi 0, %s176
      %s191 = sphi 0, %s177
      %s199 = sphi 0, %s201
      %s202 = sphi 0, %s199
      %s203 = sphi 0, %s202
      %s219 = sphi 0, %s203
    $region4: #{tpu_custom_call.1} parent=1 // loop_header_branch
      %24 = sbr.rel (%p22) target = $region8
    $region5: #{tpu_custom_call.1} parent=1 // loop_body
      %s26 = ssub.s32 %s21, 1
      %s27 = ssub.s32 %s21, 2
      %s34 = sadd.s32 1, %s29
      %p35 = scmp.ge.s32.totalorder %s34, 4
      %s36 = scalar_select %p35, 0, %s34
      %s37 = sadd.s32 1, %s28
      %s38 = scalar_select %p35, %s37, %s28
      %p39 = scmp.ge.s32.totalorder %s38, 2
      %s40 = scalar_select %p39, 0, %s38
      %s41 = ssub.s32 %s28, %s40
      %s42 = ssub.s32 %s29, %s36
      %s43 = sor.u32 %s41, %s42
      %p44 = scmp.eq.s32.totalorder %s43, 0
      %s46 = sadd.s32 %s45, 1
      %s47 = scalar_select %p44, %s45, %s46
      %p50 = pneg %p44
      %p51 = scmp.eq.s32.totalorder %s21, 7
      %p52 = por %p50, %p51
      %p53 = scmp.ne.s32.totalorder %s45, %s48
      %p54 = scmp.eq.s32.totalorder %s21, 0
      %p55 = por %p53, %p54
      %p56 = scmp.ne.s32.totalorder %s45, %s48
      %p57 = scmp.eq.s32.totalorder %s26, 7
      %p58 = por %p56, %p57
      %p59 = scmp.ne.s32.totalorder %s48, %s49
      %p60 = scmp.eq.s32.totalorder %s26, 0
      %p61 = por %p59, %p60
      %p62 = scmp.ne.s32.totalorder %s48, %s49
      %p63 = scmp.eq.s32.totalorder %s27, 7
      %p64 = por %p62, %p63
      %p66 = scmp.ne.s32.totalorder %s49, %s65
      %p67 = scmp.eq.s32.totalorder %s27, 0
      %p68 = por %p66, %p67
      %s70 = sadd.s32 %s69, 1
      %p73 = scmp.eq.s32.totalorder %s21, 7
      %p74 = scmp.ne.s32.totalorder %s69, %s71
      %p75 = scmp.eq.s32.totalorder %s21, 0
      %p76 = por %p74, %p75
      %p77 = scmp.ne.s32.totalorder %s69, %s71
      %p78 = scmp.eq.s32.totalorder %s26, 7
      %p79 = por %p77, %p78
      %p80 = scmp.ne.s32.totalorder %s71, %s72
      %p81 = scmp.eq.s32.totalorder %s26, 0
      %p82 = por %p80, %p81
      %p83 = scmp.ne.s32.totalorder %s71, %s72
      %p84 = scmp.eq.s32.totalorder %s27, 7
      %p85 = por %p83, %p84
      %p87 = scmp.ne.s32.totalorder %s72, %s86
      %p88 = scmp.eq.s32.totalorder %s27, 0
      %p89 = por %p87, %p88
      %s91 = sadd.s32 %s90, 1
      %p94 = scmp.eq.s32.totalorder %s21, 7
      %p95 = scmp.ne.s32.totalorder %s90, %s92
      %p96 = scmp.eq.s32.totalorder %s21, 0
      %p97 = por %p95, %p96
      %p98 = scmp.ne.s32.totalorder %s90, %s92
      %p99 = scmp.eq.s32.totalorder %s26, 7
      %p100 = por %p98, %p99
      %p101 = scmp.ne.s32.totalorder %s92, %s93
      %p102 = scmp.eq.s32.totalorder %s26, 0
      %p103 = por %p101, %p102
      %p104 = scmp.ne.s32.totalorder %s92, %s93
      %p105 = scmp.eq.s32.totalorder %s27, 7
      %p106 = por %p104, %p105
      %p108 = scmp.ne.s32.totalorder %s93, %s107
      %p109 = scmp.eq.s32.totalorder %s27, 0
      %p110 = por %p108, %p109
      %s112 = sadd.s32 %s111, 1
      %p115 = scmp.eq.s32.totalorder %s21, 7
      %p116 = scmp.ne.s32.totalorder %s111, %s113
      %p117 = scmp.eq.s32.totalorder %s21, 0
      %p118 = por %p116, %p117
      %p119 = scmp.ne.s32.totalorder %s111, %s113
      %p120 = scmp.eq.s32.totalorder %s26, 7
      %p121 = por %p119, %p120
      %p122 = scmp.ne.s32.totalorder %s113, %s114
      %p123 = scmp.eq.s32.totalorder %s26, 0
      %p124 = por %p122, %p123
      %p125 = scmp.ne.s32.totalorder %s113, %s114
      %p126 = scmp.eq.s32.totalorder %s27, 7
      %p127 = por %p125, %p126
      %p129 = scmp.ne.s32.totalorder %s114, %s128
      %p130 = scmp.eq.s32.totalorder %s27, 0
      %p131 = por %p129, %p130
      %s133 = sadd.s32 %s132, 1
      %p136 = scmp.eq.s32.totalorder %s21, 7
      %p137 = scmp.ne.s32.totalorder %s132, %s134
      %p138 = scmp.eq.s32.totalorder %s21, 0
      %p139 = por %p137, %p138
      %p140 = scmp.ne.s32.totalorder %s132, %s134
      %p141 = scmp.eq.s32.totalorder %s26, 7
      %p142 = por %p140, %p141
      %p143 = scmp.ne.s32.totalorder %s134, %s135
      %p144 = scmp.eq.s32.totalorder %s26, 0
      %p145 = por %p143, %p144
      %p146 = scmp.ne.s32.totalorder %s134, %s135
      %p147 = scmp.eq.s32.totalorder %s27, 7
      %p148 = por %p146, %p147
      %p150 = scmp.ne.s32.totalorder %s135, %s149
      %p151 = scmp.eq.s32.totalorder %s27, 0
      %p152 = por %p150, %p151
      %s154 = sadd.s32 %s153, 1
      %p157 = scmp.eq.s32.totalorder %s21, 7
      %p158 = scmp.ne.s32.totalorder %s153, %s155
      %p159 = scmp.eq.s32.totalorder %s21, 0
      %p160 = por %p158, %p159
      %p161 = scmp.ne.s32.totalorder %s153, %s155
      %p162 = scmp.eq.s32.totalorder %s26, 7
      %p163 = por %p161, %p162
      %p164 = scmp.ne.s32.totalorder %s155, %s156
      %p165 = scmp.eq.s32.totalorder %s26, 0
      %p166 = por %p164, %p165
      %p167 = scmp.ne.s32.totalorder %s155, %s156
      %p168 = scmp.eq.s32.totalorder %s27, 7
      %p169 = por %p167, %p168
      %p171 = scmp.ne.s32.totalorder %s156, %s170
      %p172 = scmp.eq.s32.totalorder %s27, 0
      %p173 = por %p171, %p172
      %s175 = sadd.s32 %s174, 1
      %p178 = scmp.eq.s32.totalorder %s21, 7
      %p179 = scmp.ne.s32.totalorder %s174, %s176
      %p180 = scmp.eq.s32.totalorder %s21, 0
      %p181 = por %p179, %p180
      %p182 = scmp.ne.s32.totalorder %s174, %s176
      %p183 = scmp.eq.s32.totalorder %s26, 7
      %p184 = por %p182, %p183
      %p185 = scmp.ne.s32.totalorder %s176, %s177
      %p186 = scmp.eq.s32.totalorder %s26, 0
      %p187 = por %p185, %p186
      %p188 = scmp.ne.s32.totalorder %s176, %s177
      %p189 = scmp.eq.s32.totalorder %s27, 7
      %p190 = por %p188, %p189
      %p192 = scmp.ne.s32.totalorder %s177, %s191
      %p193 = scmp.eq.s32.totalorder %s27, 0
      %p194 = por %p192, %p193
      %s195 = ssub.s32 %s28, %s40
      %s196 = ssub.s32 %s29, %s36
      %s197 = sor.u32 %s195, %s196
      %p198 = scmp.eq.s32.totalorder %s197, 0
      %s200 = sadd.s32 %s199, 1
      %s201 = scalar_select %p198, %s199, %s200
      %p204 = pneg %p198
      %p205 = scmp.eq.s32.totalorder %s21, 7
      %p206 = por %p204, %p205
      %p207 = scmp.ne.s32.totalorder %s199, %s202
      %p208 = scmp.eq.s32.totalorder %s21, 0
      %p209 = por %p207, %p208
      %p210 = scmp.ne.s32.totalorder %s199, %s202
      %p211 = scmp.eq.s32.totalorder %s26, 7
      %p212 = por %p210, %p211
      %p213 = scmp.ne.s32.totalorder %s202, %s203
      %p214 = scmp.eq.s32.totalorder %s26, 0
      %p215 = por %p213, %p214
      %p216 = scmp.ne.s32.totalorder %s202, %s203
      %p217 = scmp.eq.s32.totalorder %s27, 7
      %p218 = por %p216, %p217
      %p220 = scmp.ne.s32.totalorder %s203, %s219
      %p221 = scmp.eq.s32.totalorder %s27, 0
      %p222 = por %p220, %p221
      %p223 = scmp.le.s32.totalorder 1, %s21
      %p224 = scmp.lt.s32.totalorder %s21, 9
      %p225 = pnand %p223, %p224
      %p226 = pneg %p225
      // Predicated region
      $region9: #{tpu_custom_call.1} parent=5 // pred_check
        _
      $region10: #{tpu_custom_call.1} parent=5 // pred_check_branch
        %228 = sbr.rel (%p225) target = $region12
      $region11: #{tpu_custom_call.1} parent=5 // pred_region
        %s229 = ssub.s32 %s21, 1
        // Predicated region
        $region13: #{tpu_custom_call.1} parent=11 // pred_check
          %p230 = pneg %p82
        $region14: #{tpu_custom_call.1} parent=11 // pred_check_branch
          %232 = sbr.rel (%p230) target = $region16
        $region15: #{tpu_custom_call.1} parent=11 // pred_region
          _
        $region16: #{tpu_custom_call.1} parent=11 // pred_fallthru
          _
        // Predicated region
        $region17: #{tpu_custom_call.1} parent=11 // pred_check
          %p233 = pneg %p103
        $region18: #{tpu_custom_call.1} parent=11 // pred_check_branch
          %235 = sbr.rel (%p233) target = $region20
        $region19: #{tpu_custom_call.1} parent=11 // pred_region
          _
        $region20: #{tpu_custom_call.1} parent=11 // pred_fallthru
          _
        // Predicated region
        $region21: #{tpu_custom_call.1} parent=11 // pred_check
          %p236 = pneg %p124
        $region22: #{tpu_custom_call.1} parent=11 // pred_check_branch
          %238 = sbr.rel (%p236) target = $region24
        $region23: #{tpu_custom_call.1} parent=11 // pred_region
          _
        $region24: #{tpu_custom_call.1} parent=11 // pred_fallthru
          _
        // Predicated region
        $region25: #{tpu_custom_call.1} parent=11 // pred_check
          %p239 = pneg %p145
        $region26: #{tpu_custom_call.1} parent=11 // pred_check_branch
          %241 = sbr.rel (%p239) target = $region28
        $region27: #{tpu_custom_call.1} parent=11 // pred_region
          _
        $region28: #{tpu_custom_call.1} parent=11 // pred_fallthru
          _
        // Predicated region
        $region29: #{tpu_custom_call.1} parent=11 // pred_check
          %p242 = pneg %p166
        $region30: #{tpu_custom_call.1} parent=11 // pred_check_branch
          %244 = sbr.rel (%p242) target = $region32
        $region31: #{tpu_custom_call.1} parent=11 // pred_region
          _
        $region32: #{tpu_custom_call.1} parent=11 // pred_fallthru
          _
        // Predicated region
        $region33: #{tpu_custom_call.1} parent=11 // pred_check
          %p245 = pneg %p187
        $region34: #{tpu_custom_call.1} parent=11 // pred_check_branch
          %247 = sbr.rel (%p245) target = $region36
        $region35: #{tpu_custom_call.1} parent=11 // pred_region
          _
        $region36: #{tpu_custom_call.1} parent=11 // pred_fallthru
          _
      $region12: #{tpu_custom_call.1} parent=5 // pred_fallthru
        _
      %p248 = scmp.lt.s32.totalorder %s21, 8
      // Predicated region
      $region37: #{tpu_custom_call.1} parent=5 // pred_check
        %p249 = pneg %p248
      $region38: #{tpu_custom_call.1} parent=5 // pred_check_branch
        %251 = sbr.rel (%p249) target = $region40
      $region39: #{tpu_custom_call.1} parent=5 // pred_region
        // Predicated region
        $region41: #{tpu_custom_call.1} parent=39 // pred_check
          %p252 = pneg %p55
        $region42: #{tpu_custom_call.1} parent=39 // pred_check_branch
          %254 = sbr.rel (%p252) target = $region44
        $region43: #{tpu_custom_call.1} parent=39 // pred_region
          %s255 = sand.u32 %s45, 1
          %s256 = scalar_lea.sflag [#allocation4], %s255
          %s257 = sand.u32 %s45, 1
          %s258 = smul.addr %s257, 32
          %s259 = scalar_lea.vmem [#allocation3], %s258
          %s260 = smul.u32 4, %s29
          %s262 = ssub.s32 512, 512
          %263 = vsyncadd %s256, %s262
          %s264 = smul.addr %s28, 16
          %s265 = sadd.s32 %s260, %s264
          %s266 = smul.addr %s265, 128
          %s267 = scalar_lea.hbm %s0, %s266
          %s269 = sshll.u32 %s259, 4
          %s270 = int_to_ptr.vmem [resolvable:$true] %s269
          %272 = dma.hbm_to_vmem [thread:$0]  %s267, 512, %s270, %s256
        $region44: #{tpu_custom_call.1} parent=39 // pred_fallthru
          _
      $region40: #{tpu_custom_call.1} parent=5 // pred_fallthru
        _
      %p273 = scmp.le.s32.totalorder 1, %s21
      %p274 = scmp.lt.s32.totalorder %s21, 9
      %p275 = pnand %p273, %p274
      %p276 = pneg %p275
      // Predicated region
      $region45: #{tpu_custom_call.1} parent=5 // pred_check
        _
      $region46: #{tpu_custom_call.1} parent=5 // pred_check_branch
        %278 = sbr.rel (%p275) target = $region48
      $region47: #{tpu_custom_call.1} parent=5 // pred_region
        %s279 = ssub.s32 %s21, 1
        %s280 = sand.u32 %s48, 1
        %s281 = scalar_lea.sflag [#allocation4], %s280
        %s282 = sand.u32 %s48, 1
        %s283 = smul.addr %s282, 32
        %s284 = scalar_lea.vmem [#allocation3], %s283
        // Predicated region
        $region49: #{tpu_custom_call.1} parent=47 // pred_check
          %p285 = pneg %p61
        $region50: #{tpu_custom_call.1} parent=47 // pred_check_branch
          %287 = sbr.rel (%p285) target = $region52
        $region51: #{tpu_custom_call.1} parent=47 // pred_region
          %288 = dma.done %s281, 512
        $region52: #{tpu_custom_call.1} parent=47 // pred_fallthru
          _
        %s289 = sand.u32 %s48, 1
        %s290 = scalar_lea.sflag [#allocation4], %s289
        %s291 = sand.u32 %s48, 1
        %s292 = smul.addr %s291, 32
        %s293 = scalar_lea.vmem [#allocation3], %s292
        %p294 = pneg %p61
        %p295 = pneg %p58
        %p296 = pneg %p82
        %p297 = pneg %p79
        %p298 = pneg %p103
        %p299 = pneg %p100
        %p300 = pneg %p124
        %p301 = pneg %p121
        %p302 = pneg %p145
        %p303 = pneg %p142
        %p304 = pneg %p166
        %p305 = pneg %p163
        %p306 = pneg %p187
        %p307 = pneg %p184
        %p308 = pneg %p215
        %p309 = pneg %p212
        %s310 = sand.u32 %s202, 1
        %s311 = scalar_lea.sflag [#allocation5], %s310
        %s312 = sand.u32 %s202, 1
        %s313 = smul.addr %s312, 4
        %s314 = scalar_lea.vmem [#allocation6], %s313
        %s315 = smul.u32 4, %s31
        %s316 = smul.u32 4, %s31
        %v317 = vld [vmem:[%s284] sm:$0xff]
        %v318 = vld [vmem:[%s284 + $0x8] sm:$0xff]
        %v319 = vld [vmem:[%s284 + $0x10] sm:$0xff]
        %v320 = vld [vmem:[%s284 + $0x18] sm:$0xff]
        %v321 = vld [vmem:[%s1] sm:$0xff]
        %v322 = vld [vmem:[%s1 + $0x8] sm:$0xff]
        %v323 = vld [vmem:[%s1 + $0x10] sm:$0xff]
        %v324 = vld [vmem:[%s1 + $0x18] sm:$0xff]
        %v325 = vld [vmem:[%s4] sm:$0xff]
        %v326 = vld [vmem:[%s4 + $0x8] sm:$0xff]
        %v327 = vld [vmem:[%s4 + $0x10] sm:$0xff]
        %v328 = vld [vmem:[%s4 + $0x18] sm:$0xff]
        %330 = vset.pattern.permute.xlu0 0
        %331 = vperm.xlu0 %330, %v325
        %v332 = vpop.permute.xlu0 %331
        %335 = vset.pattern.permute.xlu0 0
        %336 = vperm.xlu0 %335, %v326
        %v337 = vpop.permute.xlu0 %336
        %340 = vset.pattern.permute.xlu0 0
        %341 = vperm.xlu0 %340, %v327
        %v342 = vpop.permute.xlu0 %341
        %345 = vset.pattern.permute.xlu0 0
        %346 = vperm.xlu0 %345, %v328
        %v347 = vpop.permute.xlu0 %346
        %vm349 = vcmask 64512
        %v351 = vsel %vm349, %v321, 0
        %v354 = vsel %vm349, %v322, 0
        %v357 = vsel %vm349, %v323, 0
        %v360 = vsel %vm349, %v324, 0
        %362 = vmatprep.subr.mxu0 %v318
        %363 = vmatpush1.msra.mxu0 %v317
        %364 = vmatprep.subr.mxu0 0.0
        %365 = vmatpush1.msra.mxu0 0.0
        %366 = vmatprep.subr.mxu0 0.0
        %367 = vmatpush1.msra.mxu0 0.0
        %368 = vmatprep.subr.mxu0 0.0
        %369 = vmatpush1.msra.mxu0 0.0
        %370 = vmatprep.subr.mxu0 0.0
        %371 = vmatpush1.msra.mxu0 0.0
        %372 = vmatprep.subr.mxu0 0.0
        %373 = vmatpush1.msra.mxu0 0.0
        %374 = vmatprep.subr.mxu0 0.0
        %375 = vmatpush1.msra.mxu0 0.0
        %376 = vmatprep.subr.mxu0 0.0
        %377 = vmatpush1.msra.mxu0 0.0
        %378 = vmatprep.subr.mxu0 0.0
        %379 = vmatpush1.msra.mxu0 0.0
        %380 = vmatprep.subr.mxu0 0.0
        %381 = vmatpush1.msra.mxu0 0.0
        %382 = vmatprep.subr.mxu0 0.0
        %383 = vmatpush1.msra.mxu0 0.0
        %384 = vmatprep.subr.mxu0 0.0
        %385 = vmatpush1.msra.mxu0 0.0
        %386 = vmatprep.subr.mxu0 0.0
        %387 = vmatpush1.msra.mxu0 0.0
        %388 = vmatprep.subr.mxu0 0.0
        %389 = vmatpush1.msra.mxu0 0.0
        %390 = vmatprep.subr.mxu0 0.0
        %391 = vmatpush1.msra.mxu0 0.0
        %392 = vmatprep.subr.mxu0 0.0
        %393 = vmatpush1.msra.mxu0 0.0
        %394 = vmatprep.subr.mxu0 0.0
        %395 = vmatpush1.msra.mxu0 0.0
        %396 = vmatprep.subr.mxu0 0.0
        %397 = vmatpush1.msra.mxu0 0.0
        %398 = vmatprep.subr.mxu0 0.0
        %399 = vmatpush1.msra.mxu0 0.0
        %400 = vmatprep.subr.mxu0 0.0
        %401 = vmatpush1.msra.mxu0 0.0
        %402 = vmatprep.subr.mxu0 0.0
        %403 = vmatpush1.msra.mxu0 0.0
        %404 = vmatprep.subr.mxu0 0.0
        %405 = vmatpush1.msra.mxu0 0.0
        %406 = vmatprep.subr.mxu0 0.0
        %407 = vmatpush1.msra.mxu0 0.0
        %408 = vmatprep.subr.mxu0 0.0
        %409 = vmatpush1.msra.mxu0 0.0
        %410 = vmatprep.subr.mxu0 0.0
        %411 = vmatpush1.msra.mxu0 0.0
        %412 = vmatprep.subr.mxu0 0.0
        %413 = vmatpush1.msra.mxu0 0.0
        %414 = vmatprep.subr.mxu0 0.0
        %415 = vmatpush1.msra.mxu0 0.0
        %416 = vmatprep.subr.mxu0 0.0
        %417 = vmatpush1.msra.mxu0 0.0
        %418 = vmatprep.subr.mxu0 0.0
        %419 = vmatpush1.msra.mxu0 0.0
        %420 = vmatprep.subr.mxu0 0.0
        %421 = vmatpush1.msra.mxu0 0.0
        %422 = vmatprep.subr.mxu0 0.0
        %423 = vmatpush1.msra.mxu0 0.0
        %424 = vmatprep.subr.mxu0 0.0
        %425 = vmatpush1.msra.mxu0 0.0
        %426 = vmatprep.mubr.f32.mxu0 0.0
        %427 = vmatmul.mubr.f32.gmra.mrb[0].mxu0 %v351
        %v428 = vpop.f32.mrb[0].mxu0
        %v429 = vadd.f32 %v332, %v428
        %v430 = vpop.f32.mrb[0].mxu0
        %v431 = vadd.f32 %v332, %v430
        %432 = vmatprep.mubr.f32.mxu0 0.0
        %433 = vmatmul.mubr.f32.gmra.mrb[0].mxu0 %v354
        %v434 = vpop.f32.mrb[0].mxu0
        %v435 = vadd.f32 %v337, %v434
        %v436 = vpop.f32.mrb[0].mxu0
        %v437 = vadd.f32 %v337, %v436
        %438 = vmatprep.mubr.f32.mxu0 0.0
        %439 = vmatmul.mubr.f32.gmra.mrb[0].mxu0 %v357
        %v440 = vpop.f32.mrb[0].mxu0
        %v441 = vadd.f32 %v342, %v440
        %v442 = vpop.f32.mrb[0].mxu0
        %v443 = vadd.f32 %v342, %v442
        %444 = vmatprep.mubr.f32.mxu0 0.0
        %445 = vmatmul.mubr.f32.gmra.mrb[0].mxu0 %v360
        %v446 = vpop.f32.mrb[0].mxu0
        %v447 = vadd.f32 %v347, %v446
        %v448 = vpop.f32.mrb[0].mxu0
        %v449 = vadd.f32 %v347, %v448
        %450 = vdwg.mxu0
        %451 = vmatprep.subr.mxu0 %v320
        %452 = vmatpush1.msra.mxu0 %v319
        %453 = vmatprep.subr.mxu0 0.0
        %454 = vmatpush1.msra.mxu0 0.0
        %455 = vmatprep.subr.mxu0 0.0
        %456 = vmatpush1.msra.mxu0 0.0
        %457 = vmatprep.subr.mxu0 0.0
        %458 = vmatpush1.msra.mxu0 0.0
        %459 = vmatprep.subr.mxu0 0.0
        %460 = vmatpush1.msra.mxu0 0.0
        %461 = vmatprep.subr.mxu0 0.0
        %462 = vmatpush1.msra.mxu0 0.0
        %463 = vmatprep.subr.mxu0 0.0
        %464 = vmatpush1.msra.mxu0 0.0
        %465 = vmatprep.subr.mxu0 0.0
        %466 = vmatpush1.msra.mxu0 0.0
        %467 = vmatprep.subr.mxu0 0.0
        %468 = vmatpush1.msra.mxu0 0.0
        %469 = vmatprep.subr.mxu0 0.0
        %470 = vmatpush1.msra.mxu0 0.0
        %471 = vmatprep.subr.mxu0 0.0
        %472 = vmatpush1.msra.mxu0 0.0
        %473 = vmatprep.subr.mxu0 0.0
        %474 = vmatpush1.msra.mxu0 0.0
        %475 = vmatprep.subr.mxu0 0.0
        %476 = vmatpush1.msra.mxu0 0.0
        %477 = vmatprep.subr.mxu0 0.0
        %478 = vmatpush1.msra.mxu0 0.0
        %479 = vmatprep.subr.mxu0 0.0
        %480 = vmatpush1.msra.mxu0 0.0
        %481 = vmatprep.subr.mxu0 0.0
        %482 = vmatpush1.msra.mxu0 0.0
        %483 = vmatprep.subr.mxu0 0.0
        %484 = vmatpush1.msra.mxu0 0.0
        %485 = vmatprep.subr.mxu0 0.0
        %486 = vmatpush1.msra.mxu0 0.0
        %487 = vmatprep.subr.mxu0 0.0
        %488 = vmatpush1.msra.mxu0 0.0
        %489 = vmatprep.subr.mxu0 0.0
        %490 = vmatpush1.msra.mxu0 0.0
        %491 = vmatprep.subr.mxu0 0.0
        %492 = vmatpush1.msra.mxu0 0.0
        %493 = vmatprep.subr.mxu0 0.0
        %494 = vmatpush1.msra.mxu0 0.0
        %495 = vmatprep.subr.mxu0 0.0
        %496 = vmatpush1.msra.mxu0 0.0
        %497 = vmatprep.subr.mxu0 0.0
        %498 = vmatpush1.msra.mxu0 0.0
        %499 = vmatprep.subr.mxu0 0.0
        %500 = vmatpush1.msra.mxu0 0.0
        %501 = vmatprep.subr.mxu0 0.0
        %502 = vmatpush1.msra.mxu0 0.0
        %503 = vmatprep.subr.mxu0 0.0
        %504 = vmatpush1.msra.mxu0 0.0
        %505 = vmatprep.subr.mxu0 0.0
        %506 = vmatpush1.msra.mxu0 0.0
        %507 = vmatprep.subr.mxu0 0.0
        %508 = vmatpush1.msra.mxu0 0.0
        %509 = vmatprep.subr.mxu0 0.0
        %510 = vmatpush1.msra.mxu0 0.0
        %511 = vmatprep.subr.mxu0 0.0
        %512 = vmatpush1.msra.mxu0 0.0
        %513 = vmatprep.subr.mxu0 0.0
        %514 = vmatpush1.msra.mxu0 0.0
        %515 = vmatprep.mubr.f32.mxu0 0.0
        %516 = vmatmul.mubr.f32.gmra.mrb[0].mxu0 %v351
        %v517 = vpop.f32.mrb[0].mxu0
        %v518 = vadd.f32 %v332, %v517
        %v519 = vpop.f32.mrb[0].mxu0
        %v520 = vadd.f32 %v332, %v519
        %521 = vmatprep.mubr.f32.mxu0 0.0
        %522 = vmatmul.mubr.f32.gmra.mrb[0].mxu0 %v354
        %v523 = vpop.f32.mrb[0].mxu0
        %v524 = vadd.f32 %v337, %v523
        %v525 = vpop.f32.mrb[0].mxu0
        %v526 = vadd.f32 %v337, %v525
        %527 = vmatprep.mubr.f32.mxu0 0.0
        %528 = vmatmul.mubr.f32.gmra.mrb[0].mxu0 %v357
        %v529 = vpop.f32.mrb[0].mxu0
        %v530 = vadd.f32 %v342, %v529
        %v531 = vpop.f32.mrb[0].mxu0
        %v532 = vadd.f32 %v342, %v531
        %533 = vmatprep.mubr.f32.mxu0 0.0
        %534 = vmatmul.mubr.f32.gmra.mrb[0].mxu0 %v360
        %v535 = vpop.f32.mrb[0].mxu0
        %v536 = vadd.f32 %v347, %v535
        %v537 = vpop.f32.mrb[0].mxu0
        %v538 = vadd.f32 %v347, %v537
        %539 = vdwg.mxu0
        %vm540 = vcmp.gt.f32.partialorder %v429, 0.0
        %vm541 = vcmp.gt.f32.partialorder %v431, 0.0
        %vm542 = vcmp.gt.f32.partialorder %v518, 0.0
        %vm543 = vcmp.gt.f32.partialorder %v520, 0.0
        %vm544 = vcmp.gt.f32.partialorder %v435, 0.0
        %vm545 = vcmp.gt.f32.partialorder %v437, 0.0
        %vm546 = vcmp.gt.f32.partialorder %v524, 0.0
        %vm547 = vcmp.gt.f32.partialorder %v526, 0.0
        %vm548 = vcmp.gt.f32.partialorder %v441, 0.0
        %vm549 = vcmp.gt.f32.partialorder %v443, 0.0
        %vm550 = vcmp.gt.f32.partialorder %v530, 0.0
        %vm551 = vcmp.gt.f32.partialorder %v532, 0.0
        %vm552 = vcmp.gt.f32.partialorder %v447, 0.0
        %vm553 = vcmp.gt.f32.partialorder %v449, 0.0
        %vm554 = vcmp.gt.f32.partialorder %v536, 0.0
        %vm555 = vcmp.gt.f32.partialorder %v538, 0.0
        %v556 = vmul.f32 %v429, 0.01
        %v557 = vmul.f32 %v431, 0.01
        %v558 = vmul.f32 %v518, 0.01
        %v559 = vmul.f32 %v520, 0.01
        %v560 = vmul.f32 %v435, 0.01
        %v561 = vmul.f32 %v437, 0.01
        %v562 = vmul.f32 %v524, 0.01
        %v563 = vmul.f32 %v526, 0.01
        %v564 = vmul.f32 %v441, 0.01
        %v565 = vmul.f32 %v443, 0.01
        %v566 = vmul.f32 %v530, 0.01
        %v567 = vmul.f32 %v532, 0.01
        %v568 = vmul.f32 %v447, 0.01
        %v569 = vmul.f32 %v449, 0.01
        %v570 = vmul.f32 %v536, 0.01
        %v571 = vmul.f32 %v538, 0.01
        %v572 = vsel %vm540, %v429, %v556
        %v573 = vsel %vm541, %v431, %v557
        %v574 = vsel %vm542, %v518, %v558
        %v575 = vsel %vm543, %v520, %v559
        %v576 = vsel %vm544, %v435, %v560
        %v577 = vsel %vm545, %v437, %v561
        %v578 = vsel %vm546, %v524, %v562
        %v579 = vsel %vm547, %v526, %v563
        %v580 = vsel %vm548, %v441, %v564
        %v581 = vsel %vm549, %v443, %v565
        %v582 = vsel %vm550, %v530, %v566
        %v583 = vsel %vm551, %v532, %v567
        %v584 = vsel %vm552, %v447, %v568
        %v585 = vsel %vm553, %v449, %v569
        %v586 = vsel %vm554, %v536, %v570
        %v587 = vsel %vm555, %v538, %v571
        %v588 = vld [vmem:[%s2] sm:$0xff]
        %v589 = vld [vmem:[%s2 + $0x8] sm:$0xff]
        %v590 = vld [vmem:[%s5] sm:$0xff]
        %v591 = vld [vmem:[%s5 + $0x8] sm:$0xff]
        %593 = vset.pattern.permute.xlu0 0
        %594 = vperm.xlu0 %593, %v590
        %v595 = vpop.permute.xlu0 %594
        %598 = vset.pattern.permute.xlu0 0
        %599 = vperm.xlu0 %598, %v591
        %v600 = vpop.permute.xlu0 %599
        %vm602 = vcmask 261120
        %v604 = vsel %vm602, %v588, 0
        %v607 = vsel %vm602, %v589, 0
        %609 = vmatprep.subr.mxu0 %v573
        %610 = vmatpush1.msra.mxu0 %v572
        %611 = vmatprep.subr.mxu0 %v577
        %612 = vmatpush1.msra.mxu0 %v576
        %613 = vmatprep.subr.mxu0 %v581
        %614 = vmatpush1.msra.mxu0 %v580
        %615 = vmatprep.subr.mxu0 %v585
        %616 = vmatpush1.msra.mxu0 %v584
        %617 = vmatprep.subr.mxu0 0.0
        %618 = vmatpush1.msra.mxu0 0.0
        %619 = vmatprep.subr.mxu0 0.0
        %620 = vmatpush1.msra.mxu0 0.0
        %621 = vmatprep.subr.mxu0 0.0
        %622 = vmatpush1.msra.mxu0 0.0
        %623 = vmatprep.subr.mxu0 0.0
        %624 = vmatpush1.msra.mxu0 0.0
        %625 = vmatprep.subr.mxu0 0.0
        %626 = vmatpush1.msra.mxu0 0.0
        %627 = vmatprep.subr.mxu0 0.0
        %628 = vmatpush1.msra.mxu0 0.0
        %629 = vmatprep.subr.mxu0 0.0
        %630 = vmatpush1.msra.mxu0 0.0
        %631 = vmatprep.subr.mxu0 0.0
        %632 = vmatpush1.msra.mxu0 0.0
        %633 = vmatprep.subr.mxu0 0.0
        %634 = vmatpush1.msra.mxu0 0.0
        %635 = vmatprep.subr.mxu0 0.0
        %636 = vmatpush1.msra.mxu0 0.0
        %637 = vmatprep.subr.mxu0 0.0
        %638 = vmatpush1.msra.mxu0 0.0
        %639 = vmatprep.subr.mxu0 0.0
        %640 = vmatpush1.msra.mxu0 0.0
        %641 = vmatprep.subr.mxu0 0.0
        %642 = vmatpush1.msra.mxu0 0.0
        %643 = vmatprep.subr.mxu0 0.0
        %644 = vmatpush1.msra.mxu0 0.0
        %645 = vmatprep.subr.mxu0 0.0
        %646 = vmatpush1.msra.mxu0 0.0
        %647 = vmatprep.subr.mxu0 0.0
        %648 = vmatpush1.msra.mxu0 0.0
        %649 = vmatprep.subr.mxu0 0.0
        %650 = vmatpush1.msra.mxu0 0.0
        %651 = vmatprep.subr.mxu0 0.0
        %652 = vmatpush1.msra.mxu0 0.0
        %653 = vmatprep.subr.mxu0 0.0
        %654 = vmatpush1.msra.mxu0 0.0
        %655 = vmatprep.subr.mxu0 0.0
        %656 = vmatpush1.msra.mxu0 0.0
        %657 = vmatprep.subr.mxu0 0.0
        %658 = vmatpush1.msra.mxu0 0.0
        %659 = vmatprep.subr.mxu0 0.0
        %660 = vmatpush1.msra.mxu0 0.0
        %661 = vmatprep.subr.mxu0 0.0
        %662 = vmatpush1.msra.mxu0 0.0
        %663 = vmatprep.subr.mxu0 0.0
        %664 = vmatpush1.msra.mxu0 0.0
        %665 = vmatprep.subr.mxu0 0.0
        %666 = vmatpush1.msra.mxu0 0.0
        %667 = vmatprep.subr.mxu0 0.0
        %668 = vmatpush1.msra.mxu0 0.0
        %669 = vmatprep.subr.mxu0 0.0
        %670 = vmatpush1.msra.mxu0 0.0
        %671 = vmatprep.subr.mxu0 0.0
        %672 = vmatpush1.msra.mxu0 0.0
        %673 = vmatprep.mubr.f32.mxu0 0.0
        %674 = vmatmul.mubr.f32.gmra.mrb[0].mxu0 %v604
        %v675 = vpop.f32.mrb[0].mxu0
        %v676 = vadd.f32 %v595, %v675
        %v677 = vpop.f32.mrb[0].mxu0
        %v678 = vadd.f32 %v595, %v677
        %679 = vmatprep.mubr.f32.mxu0 0.0
        %680 = vmatmul.mubr.f32.gmra.mrb[0].mxu0 %v607
        %v681 = vpop.f32.mrb[0].mxu0
        %v682 = vadd.f32 %v600, %v681
        %v683 = vpop.f32.mrb[0].mxu0
        %v684 = vadd.f32 %v600, %v683
        %685 = vdwg.mxu0
        %686 = vmatprep.subr.mxu0 %v575
        %687 = vmatpush1.msra.mxu0 %v574
        %688 = vmatprep.subr.mxu0 %v579
        %689 = vmatpush1.msra.mxu0 %v578
        %690 = vmatprep.subr.mxu0 %v583
        %691 = vmatpush1.msra.mxu0 %v582
        %692 = vmatprep.subr.mxu0 %v587
        %693 = vmatpush1.msra.mxu0 %v586
        %694 = vmatprep.subr.mxu0 0.0
        %695 = vmatpush1.msra.mxu0 0.0
        %696 = vmatprep.subr.mxu0 0.0
        %697 = vmatpush1.msra.mxu0 0.0
        %698 = vmatprep.subr.mxu0 0.0
        %699 = vmatpush1.msra.mxu0 0.0
        %700 = vmatprep.subr.mxu0 0.0
        %701 = vmatpush1.msra.mxu0 0.0
        %702 = vmatprep.subr.mxu0 0.0
        %703 = vmatpush1.msra.mxu0 0.0
        %704 = vmatprep.subr.mxu0 0.0
        %705 = vmatpush1.msra.mxu0 0.0
        %706 = vmatprep.subr.mxu0 0.0
        %707 = vmatpush1.msra.mxu0 0.0
        %708 = vmatprep.subr.mxu0 0.0
        %709 = vmatpush1.msra.mxu0 0.0
        %710 = vmatprep.subr.mxu0 0.0
        %711 = vmatpush1.msra.mxu0 0.0
        %712 = vmatprep.subr.mxu0 0.0
        %713 = vmatpush1.msra.mxu0 0.0
        %714 = vmatprep.subr.mxu0 0.0
        %715 = vmatpush1.msra.mxu0 0.0
        %716 = vmatprep.subr.mxu0 0.0
        %717 = vmatpush1.msra.mxu0 0.0
        %718 = vmatprep.subr.mxu0 0.0
        %719 = vmatpush1.msra.mxu0 0.0
        %720 = vmatprep.subr.mxu0 0.0
        %721 = vmatpush1.msra.mxu0 0.0
        %722 = vmatprep.subr.mxu0 0.0
        %723 = vmatpush1.msra.mxu0 0.0
        %724 = vmatprep.subr.mxu0 0.0
        %725 = vmatpush1.msra.mxu0 0.0
        %726 = vmatprep.subr.mxu0 0.0
        %727 = vmatpush1.msra.mxu0 0.0
        %728 = vmatprep.subr.mxu0 0.0
        %729 = vmatpush1.msra.mxu0 0.0
        %730 = vmatprep.subr.mxu0 0.0
        %731 = vmatpush1.msra.mxu0 0.0
        %732 = vmatprep.subr.mxu0 0.0
        %733 = vmatpush1.msra.mxu0 0.0
        %734 = vmatprep.subr.mxu0 0.0
        %735 = vmatpush1.msra.mxu0 0.0
        %736 = vmatprep.subr.mxu0 0.0
        %737 = vmatpush1.msra.mxu0 0.0
        %738 = vmatprep.subr.mxu0 0.0
        %739 = vmatpush1.msra.mxu0 0.0
        %740 = vmatprep.subr.mxu0 0.0
        %741 = vmatpush1.msra.mxu0 0.0
        %742 = vmatprep.subr.mxu0 0.0
        %743 = vmatpush1.msra.mxu0 0.0
        %744 = vmatprep.subr.mxu0 0.0
        %745 = vmatpush1.msra.mxu0 0.0
        %746 = vmatprep.subr.mxu0 0.0
        %747 = vmatpush1.msra.mxu0 0.0
        %748 = vmatprep.subr.mxu0 0.0
        %749 = vmatpush1.msra.mxu0 0.0
        %750 = vmatprep.mubr.f32.mxu0 0.0
        %751 = vmatmul.mubr.f32.gmra.mrb[0].mxu0 %v604
        %v752 = vpop.f32.mrb[0].mxu0
        %v753 = vadd.f32 %v595, %v752
        %v754 = vpop.f32.mrb[0].mxu0
        %v755 = vadd.f32 %v595, %v754
        %756 = vmatprep.mubr.f32.mxu0 0.0
        %757 = vmatmul.mubr.f32.gmra.mrb[0].mxu0 %v607
        %v758 = vpop.f32.mrb[0].mxu0
        %v759 = vadd.f32 %v600, %v758
        %v760 = vpop.f32.mrb[0].mxu0
        %v761 = vadd.f32 %v600, %v760
        %762 = vdwg.mxu0
        %vm763 = vcmp.gt.f32.partialorder %v676, 0.0
        %vm764 = vcmp.gt.f32.partialorder %v678, 0.0
        %vm765 = vcmp.gt.f32.partialorder %v753, 0.0
        %vm766 = vcmp.gt.f32.partialorder %v755, 0.0
        %vm767 = vcmp.gt.f32.partialorder %v682, 0.0
        %vm768 = vcmp.gt.f32.partialorder %v684, 0.0
        %vm769 = vcmp.gt.f32.partialorder %v759, 0.0
        %vm770 = vcmp.gt.f32.partialorder %v761, 0.0
        %v771 = vmul.f32 %v676, 0.01
        %v772 = vmul.f32 %v678, 0.01
        %v773 = vmul.f32 %v753, 0.01
        %v774 = vmul.f32 %v755, 0.01
        %v775 = vmul.f32 %v682, 0.01
        %v776 = vmul.f32 %v684, 0.01
        %v777 = vmul.f32 %v759, 0.01
        %v778 = vmul.f32 %v761, 0.01
        %v779 = vsel %vm763, %v676, %v771
        %v780 = vsel %vm764, %v678, %v772
        %v781 = vsel %vm765, %v753, %v773
        %v782 = vsel %vm766, %v755, %v774
        %v783 = vsel %vm767, %v682, %v775
        %v784 = vsel %vm768, %v684, %v776
        %v785 = vsel %vm769, %v759, %v777
        %v786 = vsel %vm770, %v761, %v778
        %v787 = vld [vmem:[%s3] sm:$0x1]
        %v788 = vld [vmem:[#allocation2] sm:$0x1]
        %790 = vset.pattern.permute.xlu0 0
        %791 = vperm.xlu0 %790, %v788
        %v792 = vpop.permute.xlu0 %791
        %v794 = vlaneseq
        %v795 = vshrl.u32 %v794, 7
        %v796 = vsub.s32 0, %v795
        %v797 = vrot.slane %v792, %v796
        %vm798 = vcmask 130048
        %v800 = vsel %vm798, %v787, 0
        %802 = vmatprep.subr.mxu0 %v780
        %803 = vmatpush1.msra.mxu0 %v779
        %804 = vmatprep.subr.mxu0 %v784
        %805 = vmatpush1.msra.mxu0 %v783
        %806 = vmatprep.subr.mxu0 0.0
        %807 = vmatpush1.msra.mxu0 0.0
        %808 = vmatprep.subr.mxu0 0.0
        %809 = vmatpush1.msra.mxu0 0.0
        %810 = vmatprep.subr.mxu0 0.0
        %811 = vmatpush1.msra.mxu0 0.0
        %812 = vmatprep.subr.mxu0 0.0
        %813 = vmatpush1.msra.mxu0 0.0
        %814 = vmatprep.subr.mxu0 0.0
        %815 = vmatpush1.msra.mxu0 0.0
        %816 = vmatprep.subr.mxu0 0.0
        %817 = vmatpush1.msra.mxu0 0.0
        %818 = vmatprep.subr.mxu0 0.0
        %819 = vmatpush1.msra.mxu0 0.0
        %820 = vmatprep.subr.mxu0 0.0
        %821 = vmatpush1.msra.mxu0 0.0
        %822 = vmatprep.subr.mxu0 0.0
        %823 = vmatpush1.msra.mxu0 0.0
        %824 = vmatprep.subr.mxu0 0.0
        %825 = vmatpush1.msra.mxu0 0.0
        %826 = vmatprep.subr.mxu0 0.0
        %827 = vmatpush1.msra.mxu0 0.0
        %828 = vmatprep.subr.mxu0 0.0
        %829 = vmatpush1.msra.mxu0 0.0
        %830 = vmatprep.subr.mxu0 0.0
        %831 = vmatpush1.msra.mxu0 0.0
        %832 = vmatprep.subr.mxu0 0.0
        %833 = vmatpush1.msra.mxu0 0.0
        %834 = vmatprep.subr.mxu0 0.0
        %835 = vmatpush1.msra.mxu0 0.0
        %836 = vmatprep.subr.mxu0 0.0
        %837 = vmatpush1.msra.mxu0 0.0
        %838 = vmatprep.subr.mxu0 0.0
        %839 = vmatpush1.msra.mxu0 0.0
        %840 = vmatprep.subr.mxu0 0.0
        %841 = vmatpush1.msra.mxu0 0.0
        %842 = vmatprep.subr.mxu0 0.0
        %843 = vmatpush1.msra.mxu0 0.0
        %844 = vmatprep.subr.mxu0 0.0
        %845 = vmatpush1.msra.mxu0 0.0
        %846 = vmatprep.subr.mxu0 0.0
        %847 = vmatpush1.msra.mxu0 0.0
        %848 = vmatprep.subr.mxu0 0.0
        %849 = vmatpush1.msra.mxu0 0.0
        %850 = vmatprep.subr.mxu0 0.0
        %851 = vmatpush1.msra.mxu0 0.0
        %852 = vmatprep.subr.mxu0 0.0
        %853 = vmatpush1.msra.mxu0 0.0
        %854 = vmatprep.subr.mxu0 0.0
        %855 = vmatpush1.msra.mxu0 0.0
        %856 = vmatprep.subr.mxu0 0.0
        %857 = vmatpush1.msra.mxu0 0.0
        %858 = vmatprep.subr.mxu0 0.0
        %859 = vmatpush1.msra.mxu0 0.0
        %860 = vmatprep.subr.mxu0 0.0
        %861 = vmatpush1.msra.mxu0 0.0
        %862 = vmatprep.subr.mxu0 0.0
        %863 = vmatpush1.msra.mxu0 0.0
        %864 = vmatprep.subr.mxu0 0.0
        %865 = vmatpush1.msra.mxu0 0.0
        %866 = vmatprep.mubr.f32.mxu0 0.0
        %867 = vmatmul.mubr.f32.gmra.mrb[0].mxu0 %v800
        %v868 = vpop.f32.mrb[0].mxu0
        %v869 = vadd.f32 %v797, %v868
        %v870 = vpop.f32.mrb[0].mxu0
        %v871 = vadd.f32 %v797, %v870
        %872 = vdwg.mxu0
        %873 = vmatprep.subr.mxu0 %v782
        %874 = vmatpush1.msra.mxu0 %v781
        %875 = vmatprep.subr.mxu0 %v786
        %876 = vmatpush1.msra.mxu0 %v785
        %877 = vmatprep.subr.mxu0 0.0
        %878 = vmatpush1.msra.mxu0 0.0
        %879 = vmatprep.subr.mxu0 0.0
        %880 = vmatpush1.msra.mxu0 0.0
        %881 = vmatprep.subr.mxu0 0.0
        %882 = vmatpush1.msra.mxu0 0.0
        %883 = vmatprep.subr.mxu0 0.0
        %884 = vmatpush1.msra.mxu0 0.0
        %885 = vmatprep.subr.mxu0 0.0
        %886 = vmatpush1.msra.mxu0 0.0
        %887 = vmatprep.subr.mxu0 0.0
        %888 = vmatpush1.msra.mxu0 0.0
        %889 = vmatprep.subr.mxu0 0.0
        %890 = vmatpush1.msra.mxu0 0.0
        %891 = vmatprep.subr.mxu0 0.0
        %892 = vmatpush1.msra.mxu0 0.0
        %893 = vmatprep.subr.mxu0 0.0
        %894 = vmatpush1.msra.mxu0 0.0
        %895 = vmatprep.subr.mxu0 0.0
        %896 = vmatpush1.msra.mxu0 0.0
        %897 = vmatprep.subr.mxu0 0.0
        %898 = vmatpush1.msra.mxu0 0.0
        %899 = vmatprep.subr.mxu0 0.0
        %900 = vmatpush1.msra.mxu0 0.0
        %901 = vmatprep.subr.mxu0 0.0
        %902 = vmatpush1.msra.mxu0 0.0
        %903 = vmatprep.subr.mxu0 0.0
        %904 = vmatpush1.msra.mxu0 0.0
        %905 = vmatprep.subr.mxu0 0.0
        %906 = vmatpush1.msra.mxu0 0.0
        %907 = vmatprep.subr.mxu0 0.0
        %908 = vmatpush1.msra.mxu0 0.0
        %909 = vmatprep.subr.mxu0 0.0
        %910 = vmatpush1.msra.mxu0 0.0
        %911 = vmatprep.subr.mxu0 0.0
        %912 = vmatpush1.msra.mxu0 0.0
        %913 = vmatprep.subr.mxu0 0.0
        %914 = vmatpush1.msra.mxu0 0.0
        %915 = vmatprep.subr.mxu0 0.0
        %916 = vmatpush1.msra.mxu0 0.0
        %917 = vmatprep.subr.mxu0 0.0
        %918 = vmatpush1.msra.mxu0 0.0
        %919 = vmatprep.subr.mxu0 0.0
        %920 = vmatpush1.msra.mxu0 0.0
        %921 = vmatprep.subr.mxu0 0.0
        %922 = vmatpush1.msra.mxu0 0.0
        %923 = vmatprep.subr.mxu0 0.0
        %924 = vmatpush1.msra.mxu0 0.0
        %925 = vmatprep.subr.mxu0 0.0
        %926 = vmatpush1.msra.mxu0 0.0
        %927 = vmatprep.subr.mxu0 0.0
        %928 = vmatpush1.msra.mxu0 0.0
        %929 = vmatprep.subr.mxu0 0.0
        %930 = vmatpush1.msra.mxu0 0.0
        %931 = vmatprep.subr.mxu0 0.0
        %932 = vmatpush1.msra.mxu0 0.0
        %933 = vmatprep.subr.mxu0 0.0
        %934 = vmatpush1.msra.mxu0 0.0
        %935 = vmatprep.subr.mxu0 0.0
        %936 = vmatpush1.msra.mxu0 0.0
        %937 = vmatprep.mubr.f32.mxu0 0.0
        %938 = vmatmul.mubr.f32.gmra.mrb[0].mxu0 %v800
        %v939 = vpop.f32.mrb[0].mxu0
        %v940 = vadd.f32 %v797, %v939
        %v941 = vpop.f32.mrb[0].mxu0
        %v942 = vadd.f32 %v797, %v941
        %943 = vdwg.mxu0
        %v948 = vcombine.low %v869, %v871
        %v949 = vcombine.low %v940, %v942
        %v951 = vunpack.c.l.s4 1966171168
        %v952 = vunpack.c.0.s8 %v951
        %v953 = vlaneseq
        %v954 = vshrl.u32 %v953, 7
        %v955 = vsub.s32 %v952, %v954
        %v956 = vrot.slane %v948, %v955
        %v958 = vunpack.c.l.s4 1966171168
        %v959 = vunpack.c.0.s8 %v958
        %v960 = vlaneseq
        %v961 = vshrl.u32 %v960, 7
        %v962 = vsub.s32 %v959, %v961
        %v963 = vrot.slane %v949, %v962
        %v964 = vcombine.low %v956, %v963
        %v966 = vunpack.c.l.s4 1966171168
        %v967 = vunpack.c.0.s8 %v966
        %v968 = vlaneseq
        %v969 = vshrl.u32 %v968, 7
        %v970 = vsub.s32 %v967, %v969
        %v971 = vrot.slane %v964, %v970
        %v973 = vlaneseq
        %vm974 = vcmp.ge.s32.totalorder %v973, 0
        %vm975 = vcmp.lt.s32.totalorder %v973, 512
        %vm976 = vmand %vm974, %vm975
        %977 = vst.msk [vmem:[%s314] sm:$0xf] %vm976, %v971
        %s978 = sand.u32 %s202, 1
        %s979 = scalar_lea.sflag [#allocation5], %s978
        %s980 = sand.u32 %s202, 1
        %s981 = smul.addr %s980, 4
        %s982 = scalar_lea.vmem [#allocation6], %s981
        // Predicated region
        $region53: #{tpu_custom_call.1} parent=47 // pred_check
          %p983 = pneg %p212
        $region54: #{tpu_custom_call.1} parent=47 // pred_check_branch
          %985 = sbr.rel (%p983) target = $region56
        $region55: #{tpu_custom_call.1} parent=47 // pred_region
          %s986 = smul.u32 4, %s31
          %s988 = ssub.s32 64, 64
          %989 = vsyncadd %s979, %s988
          %s990 = smul.addr %s30, 16
          %s991 = sadd.s32 %s986, %s990
          %s992 = smul.addr %s991, 16
          %s993 = scalar_lea.hbm %s7, %s992
          %s995 = sshll.u32 %s982, 4
          %s996 = int_to_ptr.vmem [resolvable:$true] %s995
          %998 = dma.vmem_to_hbm [thread:$0]  %s996, 64, %s993, %s979
        $region56: #{tpu_custom_call.1} parent=47 // pred_fallthru
          _
      $region48: #{tpu_custom_call.1} parent=5 // pred_fallthru
        _
      %p999 = scmp.le.s32.totalorder 2, %s21
      // Predicated region
      $region57: #{tpu_custom_call.1} parent=5 // pred_check
        %p1000 = pneg %p999
      $region58: #{tpu_custom_call.1} parent=5 // pred_check_branch
        %1002 = sbr.rel (%p1000) target = $region60
      $region59: #{tpu_custom_call.1} parent=5 // pred_region
        %s1003 = ssub.s32 %s21, 2
        // Predicated region
        $region61: #{tpu_custom_call.1} parent=59 // pred_check
          %p1004 = pneg %p218
        $region62: #{tpu_custom_call.1} parent=59 // pred_check_branch
          %1006 = sbr.rel (%p1004) target = $region64
        $region63: #{tpu_custom_call.1} parent=59 // pred_region
          %s1007 = sand.u32 %s203, 1
          %s1008 = scalar_lea.sflag [#allocation5], %s1007
          %s1009 = sand.u32 %s203, 1
          %s1010 = smul.addr %s1009, 4
          %s1011 = scalar_lea.vmem [#allocation6], %s1010
          %1012 = dma.done %s1008, 64
        $region64: #{tpu_custom_call.1} parent=59 // pred_fallthru
          _
      $region60: #{tpu_custom_call.1} parent=5 // pred_fallthru
        _
    $region6: #{tpu_custom_call.1} parent=1 // loop_footer
      %s25 = sadd.s32 1, %s21
    $region7: #{tpu_custom_call.1} parent=1 // loop_footer_branch
      %20 = sbr.rel target = $region3
    $region8: #{tpu_custom_call.1} parent=1 // loop_exit
      _
    %1013 = vsyncpa [#allocation4], 1
    %s1014 = scalar_lea.sflag [#allocation4], 1
    %1015 = vsyncpa %s1014, 1
    %1016 = vsyncpa [#allocation5], 1
    %s1017 = scalar_lea.sflag [#allocation5], 1
    %1018 = vsyncpa %s1017, 1

</llo_original>
